<compile_context>
chip_gen: v5e
topology: v5e:2x2
jax: 0.10.0
libtpu: 0.0.40
codegen_flags: <defaults>
</compile_context>

<pallas_src>
import jax
import jax.numpy as jnp
from jax import lax
from jax.experimental import pallas as pl
from jax.experimental.pallas import tpu as pltpu


_LANE = 128
_BLOCK_BYTES = 8 * 1024 * 1024      # ~8 MiB x-block target (review: 4–8 MiB)
_VMEM_LIMIT = 48 << 20              # in+out double-buffered ≈ 32 MiB + headroom;
                                    # safe on v5e/v6e (128 MiB) and v7x (64 MiB)


def _fbn_kernel(scale_ref, shift_ref, x_ref, o_ref):
    """Per-row broadcast FMA. scale/shift blocks: (row_tile, 1) f32; x: (row_tile, lanes)."""
    x = x_ref[...].astype(jnp.float32)          # f32 compute even for bf16 inputs (HBM-bound, free)
    o_ref[...] = (x * scale_ref[...] + shift_ref[...]).astype(o_ref.dtype)


def _fbn_grouped_kernel(scale_ref, shift_ref, e_ref, x_ref, o_ref):
    """g channels folded per row (lane extent = g*H*W).

    scale/shift blocks are (row_tile, g); e_ref is a (g, g*L) one-hot expansion
    matrix (E[c, l] = 1 iff l // L == c).  Per-lane params are recovered with a
    tiny MXU matmul (one nonzero per column), keeping the stores lane-dense even
    when H*W is not a multiple of 128.
    """
    s = jnp.dot(scale_ref[...], e_ref[...], preferred_element_type=jnp.float32)
    b = jnp.dot(shift_ref[...], e_ref[...], preferred_element_type=jnp.float32)
    x = x_ref[...].astype(jnp.float32)
    o_ref[...] = (x * s + b).astype(o_ref.dtype)


def _round_down(x, m):
    return (x // m) * m


def _pick_tiles(rows, lanes, dtype_bytes, block_bytes=_BLOCK_BYTES):
    """Choose (row_tile, lane_tile) for an x block of roughly `block_bytes`.

    Prefers lane_tile == full lane extent (one fully contiguous HBM slab per
    DMA) and grows the row tile to the byte budget; only tiles the lane axis
    when even a minimal full-width row group would blow the budget.
    """
    sub = max(8, 32 // dtype_bytes)             # sublane align: f32 8, bf16 16, int8/fp8 32
    if rows * lanes * dtype_bytes <= block_bytes:
        return rows, lanes                      # whole array in a single block
    row_bytes = lanes * dtype_bytes
    max_rows = block_bytes // row_bytes
    if max_rows >= sub:
        return _round_down(max_rows, sub), lanes
    # A single aligned group of full-width rows is already too big: tile lanes.
    row_tile = sub if rows >= sub else rows
    lane_tile = _round_down(block_bytes // (row_tile * dtype_bytes), _LANE)
    lane_tile = max(_LANE, min(lane_tile, lanes))
    return row_tile, lane_tile


def _choose_channel_group(C, L):
    """Channels folded per row so the lane extent is a multiple of 128.

    Returns 1 when H*W is already lane-aligned (fast path) or long enough that
    the masked tail is well amortized.  Otherwise the smallest divisor g of C
    with (g*L) % 128 == 0, falling back to g = C (longest contiguous rows).
    """
    if L % _LANE == 0 or L >= 8 * _LANE:
        return 1
    for g in range(2, C + 1):
        if C % g == 0 and (g * L) % _LANE == 0:
            return g
    return C


def frozen_batch_norm_2d(x, weight, bias, running_mean, running_var, eps=1e-5):
    """x: (N, C, H, W); weight/bias/running_mean/running_var: (C,)."""
    N, C, H, W = x.shape
    L = H * W

    # Fold the frozen stats into per-channel scale/shift once (f32, length C).
    scale = weight.astype(jnp.float32) * lax.rsqrt(
        running_var.astype(jnp.float32) + jnp.float32(eps))
    shift = bias.astype(jnp.float32) - running_mean.astype(jnp.float32) * scale

    g = _choose_channel_group(C, L)
    R = (N * C) // g
    lanes = g * L

    # Free views of the contiguous NCHW buffer; row r covers g consecutive channels.
    x2 = x.reshape(R, lanes)
    row_scale = jnp.broadcast_to(scale[None, :], (N, C)).reshape(R, g)
    row_shift = jnp.broadcast_to(shift[None, :], (N, C)).reshape(R, g)

    dtype_bytes = jnp.dtype(x.dtype).itemsize
    if g == 1:
        row_tile, lane_tile = _pick_tiles(R, lanes, dtype_bytes)
    else:
        # Grouped path keeps the full (g*H*W) lane extent in one block so the
        # one-hot expansion matrix covers every lane; grouping only triggers for
        # small spatial extents, so this stays well within the byte budget.
        row_tile = _pick_tiles(R, lanes, dtype_bytes)[0]
        lane_tile = lanes

    # Lane axis is the *minor* (last) grid dim: param blocks' index maps are
    # constant in j, so they are only re-fetched when the row block changes.
    # Do not reorder the grid.
    grid = (pl.cdiv(R, row_tile), pl.cdiv(lanes, lane_tile))

    x_spec = pl.BlockSpec((row_tile, lane_tile), lambda i, j: (i, j))
    p_spec = pl.BlockSpec((row_tile, g), lambda i, j: (i, 0))

    compiler_params = pltpu.CompilerParams(
        dimension_semantics=("parallel", "parallel"),
        vmem_limit_bytes=_VMEM_LIMIT,
    )
    out_shape = jax.ShapeDtypeStruct((R, lanes), x.dtype)

    if g == 1:
        out = pl.pallas_call(
            _fbn_kernel,
            out_shape=out_shape,
            grid_spec=pltpu.PrefetchScalarGridSpec(
                num_scalar_prefetch=0,
                grid=grid,
                in_specs=[p_spec, p_spec, x_spec],
                out_specs=x_spec,
            ),
            compiler_params=compiler_params,
        )(row_scale, row_shift, x2)
    else:
        # One-hot lane-expansion matrix: E[c, l] = 1 iff l // L == c.
        lane_chan = jnp.arange(lanes, dtype=jnp.int32) // L
        expand = (lane_chan[None, :] == jnp.arange(g, dtype=jnp.int32)[:, None]
                  ).astype(jnp.float32)
        e_spec = pl.BlockSpec((g, lanes), lambda i, j: (0, 0))
        out = pl.pallas_call(
            _fbn_grouped_kernel,
            out_shape=out_shape,
            grid_spec=pltpu.PrefetchScalarGridSpec(
                num_scalar_prefetch=0,
                grid=grid,
                in_specs=[p_spec, p_spec, e_spec, x_spec],
                out_specs=x_spec,
            ),
            compiler_params=compiler_params,
        )(row_scale, row_shift, expand, x2)

    return out.reshape(N, C, H, W)


def _reference(x, weight, bias, running_mean, running_var, eps=1e-5):
    """Pure-JAX mirror of the PyTorch forward (f32 compute, cast to x.dtype)."""
    C = weight.shape[0]
    w = weight.reshape(1, C, 1, 1).astype(jnp.float32)
    b = bias.reshape(1, C, 1, 1).astype(jnp.float32)
    rv = running_var.reshape(1, C, 1, 1).astype(jnp.float32)
    rm = running_mean.reshape(1, C, 1, 1).astype(jnp.float32)
    scale = w * lax.rsqrt(rv + eps)
    shift = b - rm * scale
    return (x.astype(jnp.float32) * scale + shift).astype(x.dtype)


if __name__ == "__main__":
    key = jax.random.PRNGKey(0)
    kx, kw, kb, km, kv, kx2 = jax.random.split(key, 6)

    # --- Test 1: nominal shape, f32, lane-aligned spatial extent (H*W = 256). ---
    N, C, H, W = 2, 4, 16, 16
    x = jax.random.normal(kx, (N, C, H, W), dtype=jnp.float32)
    weight = 1.0 + 0.1 * jax.random.normal(kw, (C,), dtype=jnp.float32)
    bias = 0.1 * jax.random.normal(kb, (C,), dtype=jnp.float32)
    running_mean = 0.05 * jax.random.normal(km, (C,), dtype=jnp.float32)
    running_var = jnp.abs(jax.random.normal(kv, (C,), dtype=jnp.float32)) + 0.5

    out = jax.block_until_ready(
        frozen_batch_norm_2d(x, weight, bias, running_mean, running_var))
    ref = _reference(x, weight, bias, running_mean, running_var)
    assert out.shape == x.shape and out.dtype == x.dtype
    assert jnp.allclose(out, ref, atol=1e-5, rtol=1e-5)

    # --- Test 2: bf16 input (FMA computed in f32, stored as bf16). ---
    xb = x.astype(jnp.bfloat16)
    outb = jax.block_until_ready(
        frozen_batch_norm_2d(xb, weight, bias, running_mean, running_var))
    refb = _reference(xb, weight, bias, running_mean, running_var)
    assert outb.dtype == jnp.bfloat16
    assert jnp.allclose(outb.astype(jnp.float32), refb.astype(jnp.float32),
                        atol=2e-2, rtol=2e-2)

    # --- Test 3: small spatial extent (H*W = 64 < 128) -> channel-grouped path
    #     (g = 2 channels per row, 128-lane rows, unmasked stores). ---
    N3, C3, H3, W3 = 2, 4, 8, 8
    x3 = jax.random.normal(kx2, (N3, C3, H3, W3), dtype=jnp.float32)
    w3 = jnp.linspace(0.5, 1.5, C3, dtype=jnp.float32)
    b3 = jnp.linspace(-1.0, 1.0, C3, dtype=jnp.float32)
    m3 = jnp.linspace(-0.2, 0.2, C3, dtype=jnp.float32)
    v3 = jnp.linspace(0.5, 1.5, C3, dtype=jnp.float32)
    out3 = jax.block_until_ready(frozen_batch_norm_2d(x3, w3, b3, m3, v3))
    ref3 = _reference(x3, w3, b3, m3, v3)
    # Loose tolerance: the one-hot expansion runs on the MXU and may execute at
    # reduced (bf16-pass) matmul precision for f32 operands; per-channel params
    # differ by >= 0.3 here, so any channel-mapping bug would still be caught.
    assert jnp.allclose(out3, ref3, atol=2.5e-2, rtol=2.5e-2)

    print("KERNEL_OK")
</pallas_src>

<mosaic_0001>
module attributes {stable_mosaic.version = 11 : i64} {
  func.func @_fbn_kernel(%arg0: i32, %arg1: i32, %arg2: memref<8x1xf32, #tpu.memory_space<vmem>>, %arg3: memref<8x1xf32, #tpu.memory_space<vmem>>, %arg4: memref<8x256xf32, #tpu.memory_space<vmem>>, %arg5: memref<8x256xf32, #tpu.memory_space<vmem>>) attributes {dimension_semantics = [#tpu.dimension_semantics<parallel>, #tpu.dimension_semantics<parallel>], iteration_bounds = array<i64: 1, 1>, scalar_prefetch = 0 : i64, scratch_operands = 0 : i64, tpu.core_type = #tpu.core_type<tc>, window_params = [{transform_indices = @transform_0, window_bounds = array<i64: 8, 1>}, {transform_indices = @transform_1, window_bounds = array<i64: 8, 1>}, {transform_indices = @transform_2, window_bounds = array<i64: 8, 256>}, {transform_indices = @transform_3, window_bounds = array<i64: 8, 256>}]} {
    %c0 = arith.constant 0 : index
    %c0_0 = arith.constant 0 : index
    %0 = vector.load %arg4[%c0, %c0_0] : memref<8x256xf32, #tpu.memory_space<vmem>>, vector<8x256xf32>
    %c0_1 = arith.constant 0 : index
    %c0_2 = arith.constant 0 : index
    %1 = vector.load %arg2[%c0_1, %c0_2] : memref<8x1xf32, #tpu.memory_space<vmem>>, vector<8x1xf32>
    %2 = vector.broadcast %1 : vector<8x1xf32> to vector<8x256xf32>
    %3 = arith.mulf %0, %2 : vector<8x256xf32>
    %c0_3 = arith.constant 0 : index
    %c0_4 = arith.constant 0 : index
    %4 = vector.load %arg3[%c0_3, %c0_4] : memref<8x1xf32, #tpu.memory_space<vmem>>, vector<8x1xf32>
    %5 = vector.broadcast %4 : vector<8x1xf32> to vector<8x256xf32>
    %6 = arith.addf %3, %5 : vector<8x256xf32>
    %c0_5 = arith.constant 0 : index
    %c0_6 = arith.constant 0 : index
    %7 = vector.load %arg5[%c0_5, %c0_6] : memref<8x256xf32, #tpu.memory_space<vmem>>, vector<8x256xf32>
    tpu.vector_store %arg5[%c0_5, %c0_6], %6 {strides = array<i32>} : memref<8x256xf32, #tpu.memory_space<vmem>>, vector<8x256xf32>,
    return
  }
  func.func @transform_0(%arg0: i32, %arg1: i32) -> (i32, i32) {
    %c0_i32 = arith.constant 0 : i32
    %c0_i32_0 = arith.constant 0 : i32
    return %arg0, %c0_i32 : i32, i32
  }
  func.func @transform_1(%arg0: i32, %arg1: i32) -> (i32, i32) {
    %c0_i32 = arith.constant 0 : i32
    %c0_i32_0 = arith.constant 0 : i32
    return %arg0, %c0_i32 : i32, i32
  }
  func.func @transform_2(%arg0: i32, %arg1: i32) -> (i32, i32) {
    %c0_i32 = arith.constant 0 : i32
    return %arg0, %arg1 : i32, i32
  }
  func.func @transform_3(%arg0: i32, %arg1: i32) -> (i32, i32) {
    %c0_i32 = arith.constant 0 : i32
    return %arg0, %arg1 : i32, i32
  }
}

</mosaic_0001>

<llo_original>
// kernel: tpu_custom_call.1
$region0: #{tpu_custom_call.1}
  #allocation0 [shape = 'u32[]', space=smem, size = 0x4, offset = 0x4, fixed_abs, tag = 'smem constant byte address 0x4 - core index']
  #allocation1 [shape = 'u32[72,128]{1,0:T(1,128)}', space=vmem, size = 0x9000, scoped, tag = 'internal scratch']
  %s0 = inlined_call_operand.vmem [shape: f32[8,1], index: 0, kind: input, shape index: {}]
  %s1 = inlined_call_operand.vmem [shape: f32[8,1], index: 1, kind: input, shape index: {}]
  %s2 = inlined_call_operand.vmem [shape: f32[8,256], index: 2, kind: input, shape index: {}]
  %s3 = inlined_call_operand.hbm [shape: f32[8,256], index: 3, kind: output, shape index: {}]
  %s4 = sld [smem:[#allocation0]]
  $region22: #{tpu_custom_call.1} parent=0
    _
  %s6 = ssub.s32 1, %s4
  %s7 = scalar_select 0, %s6, %s4
  $region1: #{tpu_custom_call.1} parent=0
    #allocation2 [shape = 'u8[8192]{0}', space=vmem, size = 0x2000, scoped, tag = 'output window, operand 0, single buffered']
    #allocation3 [shape = 's32[1]{0}', space=sflag, size = 0x4, scoped, tag = 'scoped memory for tpu_custom_call.1']
    %8 = vsyncpa [#allocation3], 0
    // Predicated region
    $region2: #{tpu_custom_call.1} parent=1 // pred_check
      _
    $region3: #{tpu_custom_call.1} parent=1 // pred_check_branch
      %10 = sbr.rel (0) target = $region5
    $region4: #{tpu_custom_call.1} parent=1 // pred_region
      _
    $region5: #{tpu_custom_call.1} parent=1 // pred_fallthru
      _
    // Predicated region
    $region6: #{tpu_custom_call.1} parent=1 // pred_check
      _
    $region7: #{tpu_custom_call.1} parent=1 // pred_check_branch
      %12 = sbr.rel (0) target = $region9
    $region8: #{tpu_custom_call.1} parent=1 // pred_region
      _
    $region9: #{tpu_custom_call.1} parent=1 // pred_fallthru
      _
    // Predicated region
    $region10: #{tpu_custom_call.1} parent=1 // pred_check
      _
    $region11: #{tpu_custom_call.1} parent=1 // pred_check_branch
      %14 = sbr.rel (0) target = $region13
    $region12: #{tpu_custom_call.1} parent=1 // pred_region
      _
    $region13: #{tpu_custom_call.1} parent=1 // pred_fallthru
      _
    %v15 = vld [vmem:[%s2] sm:$0xff]
    %v16 = vld [vmem:[%s2 + $0x8] sm:$0xff]
    %v17 = vld [vmem:[%s0] sm:$0xff]
    %19 = vset.pattern.permute.xlu0 0
    %20 = vperm.xlu0 %19, %v17
    %v21 = vpop.permute.xlu0 %20
    %v23 = vmul.f32 %v15, %v21
    %v24 = vmul.f32 %v16, %v21
    %v25 = vld [vmem:[%s1] sm:$0xff]
    %27 = vset.pattern.permute.xlu0 0
    %28 = vperm.xlu0 %27, %v25
    %v29 = vpop.permute.xlu0 %28
    %v31 = vadd.f32 %v23, %v29
    %v32 = vadd.f32 %v24, %v29
    %33 = vst [vmem:[#allocation2] sm:$0xff] %v31
    %34 = vst [vmem:[#allocation2 + $0x8] sm:$0xff] %v32
    // Predicated region
    $region14: #{tpu_custom_call.1} parent=1 // pred_check
      _
    $region15: #{tpu_custom_call.1} parent=1 // pred_check_branch
      %36 = sbr.rel (0) target = $region17
    $region16: #{tpu_custom_call.1} parent=1 // pred_region
      %38 = vsyncadd [#allocation3], 0
      %s40 = sshll.u32 [#allocation2], 4
      %s41 = int_to_ptr.vmem [resolvable:$true] %s40
      %s42 = sshll.u32 %s3, 4
      %s43 = int_to_ptr.hbm [resolvable:$true] %s42
      %45 = dma.vmem_to_hbm [thread:$0]  %s41, 256, %s43, [#allocation3]
    $region17: #{tpu_custom_call.1} parent=1 // pred_fallthru
      _
    // Predicated region
    $region18: #{tpu_custom_call.1} parent=1 // pred_check
      _
    $region19: #{tpu_custom_call.1} parent=1 // pred_check_branch
      %47 = sbr.rel (0) target = $region21
    $region20: #{tpu_custom_call.1} parent=1 // pred_region
      %49 = dma.done [#allocation3], 256
    $region21: #{tpu_custom_call.1} parent=1 // pred_fallthru
      _
    %50 = vsyncpa [#allocation3], 1

</llo_original>
